<compile_context>
chip_gen: v7x
topology: tpu7x:2x2x1
jax: 0.10.0
libtpu: 0.0.40
codegen_flags: <defaults>
</compile_context>

<pallas_src>
import functools

import jax
import jax.numpy as jnp
from jax.experimental import pallas as pl
from jax.experimental.pallas import tpu as pltpu  # noqa: F401  (TPU backend)


def _focal_loss_kernel(logits_ref, targets_ref, alpha_ref, out_ref, *, gamma, size_average):
    logits = logits_ref[...].astype(jnp.float32)    # (N, C)  classes on the lane axis
    tgt = targets_ref[...]                          # (N, 1)  int32
    alpha = alpha_ref[...].astype(jnp.float32)      # (1, C)

    n, c = logits.shape

    # One-hot class mask (replaces torch scatter_): VPU compare against a lane iota.
    class_ids = jax.lax.broadcasted_iota(jnp.int32, (n, c), dimension=1)
    mask = (class_ids == tgt).astype(jnp.float32)   # (N, C) one-hot

    # Select the target logit by masking.  Non-target columns become exactly 0 and
    # contribute exactly 0 to the loss because (1 - exp(0))^gamma * 0 == 0, so the
    # whole computation stays dense over the (N, C) tile -- no (N, 1) gathers.
    x = logits * mask                               # x[i, t_i] = log_p_i, else 0
    focal = (1.0 - jnp.exp(x)) ** gamma             # gamma is a Python int -> integer_pow (VPU)
    elem = -(alpha * focal * x)                     # per-element focal-loss terms

    # Reductions: lane (class) reduce, then sublane (batch) reduce -> (1, 1).
    per_row = jnp.sum(elem, axis=1, keepdims=True)  # (N, 1) == batch_loss
    total = jnp.sum(per_row, axis=0, keepdims=True)  # (1, 1)
    if size_average:
        total = total * (1.0 / n)                   # compile-time reciprocal, no divide
    out_ref[...] = total.astype(out_ref.dtype)


def focal_loss(inputs, targets, alpha=None, gamma=5, size_average=True):
    """Pallas TPU equivalent of FocalLoss.forward.

    inputs:  (N, C) float logits/log-probabilities
    targets: (N,)   integer class ids
    alpha:   optional (C,) per-class weights (default: ones, as in the module)
    """
    n, c = inputs.shape
    if alpha is None:
        alpha = jnp.ones((c,), jnp.float32)         # matches torch.ones(class_num, 1)
    alpha = jnp.asarray(alpha, jnp.float32).reshape(1, c)
    targets2d = targets.astype(jnp.int32).reshape(n, 1)

    kernel = functools.partial(_focal_loss_kernel, gamma=gamma, size_average=size_average)

    # Single-block, single-launch kernel: at these sizes launch overhead dominates,
    # so everything (mask build, select, pow, reduction) is fused into one call.
    # TODO(synk): for large N, tile the batch axis with a grid and accumulate the
    #             partial sums in a VMEM scratch (pl.when init/finalize).
    out = pl.pallas_call(
        kernel,
        out_shape=jax.ShapeDtypeStruct((1, 1), jnp.float32),
        grid=(1,),
        in_specs=[
            pl.BlockSpec((n, c), lambda i: (0, 0)),
            pl.BlockSpec((n, 1), lambda i: (0, 0)),
            pl.BlockSpec((1, c), lambda i: (0, 0)),
        ],
        out_specs=pl.BlockSpec((1, 1), lambda i: (0, 0)),
    )(inputs, targets2d, alpha)
    return out[0, 0]


if __name__ == "__main__":
    key = jax.random.PRNGKey(0)
    k_in, k_tgt = jax.random.split(key)

    N, C = 16, 4  # small shapes consistent with the module (class_num = 4)

    # The reference implementation exponentiates the selected input, i.e. it expects
    # log-probabilities; feed log_softmax of random logits as in real usage.
    raw = jax.random.normal(k_in, (N, C), jnp.float32)
    inputs = jax.nn.log_softmax(raw, axis=-1)
    targets = jax.random.randint(k_tgt, (N,), 0, C, dtype=jnp.int32)

    loss_fn = jax.jit(functools.partial(focal_loss, gamma=5, size_average=True))
    loss = loss_fn(inputs, targets)
    loss = jax.block_until_ready(loss)

    # Pure-JAX reference of the exact PyTorch forward (correctness check).
    log_p = jnp.take_along_axis(inputs, targets[:, None], axis=1)   # (N, 1)
    probs = jnp.exp(log_p)
    alpha_t = jnp.ones((C,), jnp.float32)[targets][:, None]         # (N, 1)
    ref = jnp.mean(-alpha_t * (1.0 - probs) ** 5 * log_p)

    assert loss.shape == ()
    assert bool(jnp.isfinite(loss))
    assert bool(jnp.allclose(loss, ref, rtol=1e-5, atol=1e-6))
    print("KERNEL_OK")
</pallas_src>

<mosaic_0001>
module attributes {stable_mosaic.version = 11 : i64} {
  func.func @_focal_loss_kernel(%arg0: i32, %arg1: memref<16x4xf32, #tpu.memory_space<vmem>>, %arg2: memref<16x1xi32, #tpu.memory_space<vmem>>, %arg3: memref<1x4xf32, #tpu.memory_space<vmem>>, %arg4: memref<1x1xf32, #tpu.memory_space<vmem>>) attributes {dimension_semantics = [#tpu.dimension_semantics<arbitrary>], iteration_bounds = array<i64: 1>, scalar_prefetch = 0 : i64, scratch_operands = 0 : i64, tpu.core_type = #tpu.core_type<tc>, window_params = [{pipeline_mode = #tpu.pipeline_mode<synchronous>, transform_indices = @transform_0, window_bounds = array<i64: 16, 4>}, {pipeline_mode = #tpu.pipeline_mode<synchronous>, transform_indices = @transform_1, window_bounds = array<i64: 16, 1>}, {pipeline_mode = #tpu.pipeline_mode<synchronous>, transform_indices = @transform_2, window_bounds = array<i64: 1, 4>}, {pipeline_mode = #tpu.pipeline_mode<synchronous>, transform_indices = @transform_3, window_bounds = array<i64: 1, 1>}]} {
    %c0 = arith.constant 0 : index
    %c0_0 = arith.constant 0 : index
    %0 = vector.load %arg1[%c0, %c0_0] : memref<16x4xf32, #tpu.memory_space<vmem>>, vector<16x4xf32>
    %c0_1 = arith.constant 0 : index
    %c0_2 = arith.constant 0 : index
    %1 = vector.load %arg2[%c0_1, %c0_2] : memref<16x1xi32, #tpu.memory_space<vmem>>, vector<16x1xi32>
    %c0_3 = arith.constant 0 : index
    %c0_4 = arith.constant 0 : index
    %2 = vector.load %arg3[%c0_3, %c0_4] : memref<1x4xf32, #tpu.memory_space<vmem>>, vector<1x4xf32>
    %3 = tpu.iota {dimensions = array<i32: 1>} : vector<16x4xi32>
    %4 = vector.broadcast %1 : vector<16x1xi32> to vector<16x4xi32>
    %5 = arith.cmpi eq, %3, %4 : vector<16x4xi32>
    %6 = arith.extui %5 : vector<16x4xi1> to vector<16x4xi32>
    %7 = arith.sitofp %6 : vector<16x4xi32> to vector<16x4xf32>
    %8 = arith.mulf %0, %7 : vector<16x4xf32>
    %9 = math.exp %8 : vector<16x4xf32>
    %cst = arith.constant 1.000000e+00 : f32
    %10 = vector.broadcast %cst : f32 to vector<16x4xf32>
    %11 = arith.subf %10, %9 : vector<16x4xf32>
    %12 = arith.mulf %11, %11 : vector<16x4xf32>
    %13 = arith.mulf %12, %12 : vector<16x4xf32>
    %14 = arith.mulf %11, %13 : vector<16x4xf32>
    %15 = vector.broadcast %2 : vector<1x4xf32> to vector<16x4xf32>
    %16 = arith.mulf %15, %14 : vector<16x4xf32>
    %17 = arith.mulf %16, %8 : vector<16x4xf32>
    %cst_5 = arith.constant 0.000000e+00 : f32
    %18 = vector.broadcast %cst_5 : f32 to vector<16x4xf32>
    %19 = arith.subf %18, %17 : vector<16x4xf32>
    %cst_6 = arith.constant dense<0.000000e+00> : vector<16xf32>
    %20 = vector.multi_reduction <add>, %19, %cst_6 [1] : vector<16x4xf32> to vector<16xf32>
    %21 = vector.shape_cast %20 : vector<16xf32> to vector<16x1xf32>
    %cst_7 = arith.constant dense<0.000000e+00> : vector<1xf32>
    %22 = vector.multi_reduction <add>, %21, %cst_7 [0] : vector<16x1xf32> to vector<1xf32>
    %23 = vector.shape_cast %22 : vector<1xf32> to vector<1x1xf32>
    %cst_8 = arith.constant 6.250000e-02 : f32
    %24 = vector.broadcast %cst_8 : f32 to vector<1x1xf32>
    %25 = arith.mulf %23, %24 : vector<1x1xf32>
    %c0_9 = arith.constant 0 : index
    %c0_10 = arith.constant 0 : index
    %26 = vector.load %arg4[%c0_9, %c0_10] : memref<1x1xf32, #tpu.memory_space<vmem>>, vector<1x1xf32>
    tpu.vector_store %arg4[%c0_9, %c0_10], %25 {strides = array<i32>} : memref<1x1xf32, #tpu.memory_space<vmem>>, vector<1x1xf32>,
    return
  }
  func.func @transform_0(%arg0: i32) -> (i32, i32) {
    %c0_i32 = arith.constant 0 : i32
    %c0_i32_0 = arith.constant 0 : i32
    %c0_i32_1 = arith.constant 0 : i32
    return %c0_i32, %c0_i32_0 : i32, i32
  }
  func.func @transform_1(%arg0: i32) -> (i32, i32) {
    %c0_i32 = arith.constant 0 : i32
    %c0_i32_0 = arith.constant 0 : i32
    %c0_i32_1 = arith.constant 0 : i32
    return %c0_i32, %c0_i32_0 : i32, i32
  }
  func.func @transform_2(%arg0: i32) -> (i32, i32) {
    %c0_i32 = arith.constant 0 : i32
    %c0_i32_0 = arith.constant 0 : i32
    %c0_i32_1 = arith.constant 0 : i32
    return %c0_i32, %c0_i32_0 : i32, i32
  }
  func.func @transform_3(%arg0: i32) -> (i32, i32) {
    %c0_i32 = arith.constant 0 : i32
    %c0_i32_0 = arith.constant 0 : i32
    %c0_i32_1 = arith.constant 0 : i32
    return %c0_i32, %c0_i32_0 : i32, i32
  }
}

</mosaic_0001>

<llo_original>
// kernel: focal_loss.1
$region0: #{focal_loss.1}
  #allocation0 [shape = 'u32[]', space=smem, size = 0x4, offset = 0x4, fixed_abs, tag = 'smem constant byte address 0x4 - core index']
  #allocation1 [shape = 'u32[144,128]{1,0:T(1,128)}', space=vmem, size = 0x12000, scoped, tag = 'internal scratch']
  %s0 = inlined_call_operand.vmem [shape: f32[16,4], index: 0, kind: input, shape index: {}]
  %s1 = inlined_call_operand.vmem [shape: s32[16,1], index: 1, kind: input, shape index: {}]
  %s2 = inlined_call_operand.vmem [shape: f32[1,4], index: 2, kind: input, shape index: {}]
  %s3 = inlined_call_operand.hbm [shape: f32[1,1], index: 3, kind: output, shape index: {}]
  %s4 = sld [smem:[#allocation0]]
  $region22: #{focal_loss.1} parent=0
    _
  %s6 = ssub.s32 1, %s4
  %s7 = scalar_select 0, %s6, %s4
  $region1: #{focal_loss.1} parent=0
    #allocation2 [shape = 'u8[512]{0}', space=vmem, size = 0x400, scoped, tag = 'output window, operand 0, single buffered']
    #allocation3 [shape = 's32[1]{0}', space=sflag, size = 0x4, scoped, tag = 'scoped memory for focal_loss.1']
    %8 = vsyncpa [#allocation3], 0
    // Predicated region
    $region2: #{focal_loss.1} parent=1 // pred_check
      _
    $region3: #{focal_loss.1} parent=1 // pred_check_branch
      %10 = sbr.rel (0) target = $region5
    $region4: #{focal_loss.1} parent=1 // pred_region
      _
    $region5: #{focal_loss.1} parent=1 // pred_fallthru
      _
    // Predicated region
    $region6: #{focal_loss.1} parent=1 // pred_check
      _
    $region7: #{focal_loss.1} parent=1 // pred_check_branch
      %12 = sbr.rel (0) target = $region9
    $region8: #{focal_loss.1} parent=1 // pred_region
      _
    $region9: #{focal_loss.1} parent=1 // pred_fallthru
      _
    // Predicated region
    $region10: #{focal_loss.1} parent=1 // pred_check
      _
    $region11: #{focal_loss.1} parent=1 // pred_check_branch
      %14 = sbr.rel (0) target = $region13
    $region12: #{focal_loss.1} parent=1 // pred_region
      _
    $region13: #{focal_loss.1} parent=1 // pred_fallthru
      _
    %v15 = vld [vmem:[%s0] sm:$0xff]
    %v16 = vld [vmem:[%s0 + $0x8] sm:$0xff]
    %v17 = vld [vmem:[%s1] sm:$0xff]
    %v18 = vld [vmem:[%s1 + $0x8] sm:$0xff]
    %v19 = vld [vmem:[%s2] sm:$0x1]
    %v20 = vlaneseq
    %v21 = vand.u32 %v20, 127
    %22 = vset.pattern.permute.xlu0 0
    %23 = vperm.xlu0 %22, %v17
    %v24 = vpop.permute.xlu0 %23
    %25 = vset.pattern.permute.xlu0 0
    %26 = vperm.xlu0 %25, %v18
    %v27 = vpop.permute.xlu0 %26
    %vm28 = vcmp.eq.s32.totalorder %v21, %v24
    %vm29 = vcmp.eq.s32.totalorder %v21, %v27
    %v30 = vsel %vm28, 1, 0
    %v31 = vsel %vm29, 1, 0
    %v32 = vcvt.s32.f32 %v30
    %v33 = vcvt.s32.f32 %v31
    %v34 = vmul.f32 %v15, %v32
    %v35 = vmul.f32 %v16, %v33
    %v36 = vmul.f32 %v34, 1.442695
    %v37 = vpow.pop %v36
    %v38 = vmul.f32 %v35, 1.442695
    %v39 = vpow.pop %v38
    %v40 = vsub.f32 1.0, %v37
    %v41 = vsub.f32 1.0, %v39
    %v42 = vmul.f32 %v40, %v40
    %v43 = vmul.f32 %v41, %v41
    %v44 = vmul.f32 %v42, %v42
    %v45 = vmul.f32 %v43, %v43
    %v46 = vmul.f32 %v40, %v44
    %v47 = vmul.f32 %v41, %v45
    %v49 = vlaneseq
    %v50 = vshrl.u32 %v49, 7
    %v51 = vsub.s32 0, %v50
    %v52 = vrot.slane %v19, %v51
    %v54 = vmul.f32 %v52, %v46
    %v55 = vmul.f32 %v52, %v47
    %v56 = vmul.f32 %v54, %v34
    %v57 = vmul.f32 %v55, %v35
    %v58 = vsub.f32 0.0, %v56
    %v59 = vsub.f32 0.0, %v57
    %vm60 = vcmask 31744
    %v61 = vsel %vm60, %v58, 0.0
    %62 = vadd.xlane.f32.xlu0 %v61
    %v63 = vpop.xlane.xlu0 %62
    %v64 = vsel %vm60, %v59, 0.0
    %65 = vadd.xlane.f32.xlu0 %v64
    %v66 = vpop.xlane.xlu0 %65
    %v67 = vadd.f32 %v63, %v66
    %v68 = vrot.slane %v67, 4
    %v69 = vadd.f32 %v67, %v68
    %v70 = vrot.slane %v69, 2
    %v71 = vadd.f32 %v69, %v70
    %v72 = vrot.slane %v71, 1
    %v73 = vadd.f32 %v71, %v72
    %v74 = vmul.f32 %v73, 0.0625
    %vm75 = vcmask 0
    %76 = vst.msk [vmem:[#allocation2] sm:$0x1] %vm75, %v74
    // Predicated region
    $region14: #{focal_loss.1} parent=1 // pred_check
      _
    $region15: #{focal_loss.1} parent=1 // pred_check_branch
      %78 = sbr.rel (0) target = $region17
    $region16: #{focal_loss.1} parent=1 // pred_region
      %s80 = ssub.s32 16, 16
      %81 = vsyncadd [#allocation3], %s80
      %s83 = sshll.u32 [#allocation2], 4
      %s84 = int_to_ptr.vmem [resolvable:$true] %s83
      %86 = dma.vmem_to_hbm [thread:$0]  %s84, 16, %s3, [#allocation3]
    $region17: #{focal_loss.1} parent=1 // pred_fallthru
      _
    // Predicated region
    $region18: #{focal_loss.1} parent=1 // pred_check
      _
    $region19: #{focal_loss.1} parent=1 // pred_check_branch
      %88 = sbr.rel (0) target = $region21
    $region20: #{focal_loss.1} parent=1 // pred_region
      %89 = dma.done [#allocation3], 16
    $region21: #{focal_loss.1} parent=1 // pred_fallthru
      _
    %90 = vsyncpa [#allocation3], 1

</llo_original>
